<compile_context>
chip_gen: v7x
topology: tpu7x:2x2x1
jax: 0.10.0
libtpu: 0.0.40
codegen_flags: <defaults>
</compile_context>

<pallas_src>
import functools
import math

import jax
import jax.numpy as jnp
from jax.experimental import pallas as pl
from jax.experimental.pallas import tpu as pltpu

EXPANSION = 4  # Bottleneck expansion
_LANE = 128
_MAX_TK = 4608   # bf16 weight tile tk x tn stays <= ~4.7 MiB even at tn=512
_MAX_TM = 256


# ----------------------------------------------------------------------------
# Pallas kernels
# ----------------------------------------------------------------------------
def _mm_bn_kernel(*refs, relu, has_res):
    """Tiled bf16 matmul (f32 accumulate) + folded BN, optional residual, ReLU."""
    if has_res:
        a_ref, b_ref, s_ref, c_ref, r_ref, o_ref, acc_ref = refs
    else:
        a_ref, b_ref, s_ref, c_ref, o_ref, acc_ref = refs
        r_ref = None

    @pl.when(pl.program_id(2) == 0)
    def _():
        acc_ref[...] = jnp.zeros_like(acc_ref)

    acc_ref[...] += jnp.dot(a_ref[...], b_ref[...],
                            preferred_element_type=jnp.float32)

    @pl.when(pl.program_id(2) == pl.num_programs(2) - 1)
    def _():
        y = acc_ref[...] * s_ref[...] + c_ref[...]          # f32 epilogue
        if has_res:
            y = y + r_ref[...].astype(jnp.float32)
        if relu:
            y = jnp.maximum(y, 0.0)
        o_ref[...] = y.astype(o_ref.dtype)


def _avgpool_kernel(x_ref, o_ref, acc_ref, *, inv_count):
    """Global spatial mean, tiled over the spatial axis with an f32 accumulator."""
    @pl.when(pl.program_id(0) == 0)
    def _():
        acc_ref[...] = jnp.zeros_like(acc_ref)

    acc_ref[...] += jnp.sum(x_ref[...].astype(jnp.float32), axis=1)

    @pl.when(pl.program_id(0) == pl.num_programs(0) - 1)
    def _():
        o_ref[...] = acc_ref[...] * inv_count


# ----------------------------------------------------------------------------
# Tiling helpers
# ----------------------------------------------------------------------------
def _pad_to(n, m):
    return ((n + m - 1) // m) * m


def _choose_tk(K):
    """Whole (128-padded) K if <= 4608, else largest 128-multiple divisor <= 4608."""
    kp = _pad_to(K, _LANE)
    if kp <= _MAX_TK:
        return kp
    for cand in range(_MAX_TK, _LANE - 1, -_LANE):
        if kp % cand == 0:
            return cand
    return _LANE


def _choose_tm(M):
    if M >= _MAX_TM:
        return _MAX_TM
    return _pad_to(max(M, 16), 16)


def _choose_tn(Np, m_blocks):
    """Largest lane tile (<=512) dividing Np.  When the M grid has a single
    block, keep >= 2 N blocks so megacore (v7x) still has a parallel axis."""
    for tn in (512, 256, 128):
        if Np % tn != 0:
            continue
        if m_blocks == 1 and Np > _LANE and Np // tn < 2:
            continue
        return tn
    return min(Np, _LANE)


def _vmem_limit_bytes(tm, tn, tk, has_res):
    """Double-buffered inputs/outputs + f32 accumulator, plus 16 MiB headroom."""
    per_buf = (tm * tk + tk * tn + tm * tn * (1 + int(has_res))) * 2 + 2 * tn * 4
    need = 2 * per_buf + tm * tn * 4
    return int(min(need + 16 * 1024 * 1024, 100 * 1024 * 1024))


# ----------------------------------------------------------------------------
# Pallas wrappers
# ----------------------------------------------------------------------------
def _fused_matmul(a, b_pad, s_pad, c_pad, res, *, relu, n_out, tk):
    """(M,K) @ pre-padded (Kp,Np) bf16 weights, * scale + bias [+res][relu]."""
    M, K = a.shape
    Kp, Np = b_pad.shape
    has_res = res is not None
    tm = _choose_tm(M)
    Mp = _pad_to(M, tm)
    tn = _choose_tn(Np, Mp // tm)

    a_p = a.astype(jnp.bfloat16)
    if Mp != M or Kp != K:
        a_p = jnp.pad(a_p, ((0, Mp - M), (0, Kp - K)))

    inputs = [a_p, b_pad, s_pad, c_pad]
    in_specs = [
        pl.BlockSpec((tm, tk), lambda i, j, k: (i, k)),
        pl.BlockSpec((tk, tn), lambda i, j, k: (k, j)),
        pl.BlockSpec((1, tn), lambda i, j, k: (0, j)),
        pl.BlockSpec((1, tn), lambda i, j, k: (0, j)),
    ]
    if has_res:
        r_p = res.astype(jnp.bfloat16)
        if Mp != M or Np != n_out:
            r_p = jnp.pad(r_p, ((0, Mp - M), (0, Np - n_out)))
        inputs.append(r_p)
        in_specs.append(pl.BlockSpec((tm, tn), lambda i, j, k: (i, j)))

    flops = 2 * Mp * Kp * Np
    bytes_accessed = (Mp * Kp + Kp * Np + (2 + int(has_res)) * Mp * Np) * 2 + 2 * Np * 4

    out = pl.pallas_call(
        functools.partial(_mm_bn_kernel, relu=relu, has_res=has_res),
        out_shape=jax.ShapeDtypeStruct((Mp, Np), jnp.bfloat16),
        grid_spec=pltpu.PrefetchScalarGridSpec(
            num_scalar_prefetch=0,
            grid=(Mp // tm, Np // tn, Kp // tk),
            in_specs=in_specs,
            out_specs=pl.BlockSpec((tm, tn), lambda i, j, k: (i, j)),
            scratch_shapes=[pltpu.VMEM((tm, tn), jnp.float32)],
        ),
        compiler_params=pltpu.CompilerParams(
            dimension_semantics=("parallel", "parallel", "arbitrary"),
            vmem_limit_bytes=_vmem_limit_bytes(tm, tn, tk, has_res)),
        cost_estimate=pl.CostEstimate(flops=flops, transcendentals=0,
                                      bytes_accessed=bytes_accessed),
    )(*inputs)
    if Mp != M or Np != n_out:
        out = out[:M, :n_out]
    return out


def _extract_patches(x, ksize, stride, pad):
    """im2col for 3D conv (data rearrangement; fuses into surrounding XLA glue)."""
    B, T, H, W, C = x.shape
    kt, kh, kw = ksize
    st, sh, sw = stride
    pt, ph, pw = pad
    xp = jnp.pad(x, ((0, 0), (pt, pt), (ph, ph), (pw, pw), (0, 0)))
    To = (T + 2 * pt - kt) // st + 1
    Ho = (H + 2 * ph - kh) // sh + 1
    Wo = (W + 2 * pw - kw) // sw + 1
    cols = []
    for dt in range(kt):
        for dh in range(kh):
            for dw in range(kw):
                cols.append(xp[:, dt:dt + (To - 1) * st + 1:st,
                               dh:dh + (Ho - 1) * sh + 1:sh,
                               dw:dw + (Wo - 1) * sw + 1:sw, :])
    # (B,To,Ho,Wo,k^3,C) -> (M, k^3 * C); (kt,kh,kw,Cin) ordering matches weights.
    patches = jnp.stack(cols, axis=-2)
    return patches.reshape(B * To * Ho * Wo, kt * kh * kw * C), (B, To, Ho, Wo)


def conv3d_bn_act(x, p, cfg, res=None, *, relu):
    """Conv3d (no bias) + folded BatchNorm + optional residual + optional ReLU."""
    patches, (B, To, Ho, Wo) = _extract_patches(x, cfg["ksize"], cfg["stride"],
                                                cfg["pad"])
    res_mat = None if res is None else res.reshape(-1, cfg["N"])
    y = _fused_matmul(patches, p["w"], p["s"], p["b"], res_mat,
                      relu=relu, n_out=cfg["N"], tk=cfg["tk"])
    return y.reshape(B, To, Ho, Wo, cfg["N"])


def _maxpool1d(x, axis):
    """3-tap, stride-2, pad-1 max along one axis (VPU-bound XLA glue)."""
    neg = float(jnp.finfo(x.dtype).min)
    L = x.shape[axis]
    pad = [(0, 0)] * x.ndim
    pad[axis] = (1, 1)
    xp = jnp.pad(x, pad, constant_values=neg)
    Lo = (L - 1) // 2 + 1

    def tap(off):
        idx = [slice(None)] * x.ndim
        idx[axis] = slice(off, off + 2 * (Lo - 1) + 1, 2)
        return xp[tuple(idx)]

    return jnp.maximum(jnp.maximum(tap(0), tap(1)), tap(2))


def maxpool3d(x):
    """MaxPool3d(kernel_size=3, stride=2, padding=1), separable over W, H, T.

    Replaces the previous 27x stacked-tap Pallas reduction: max is associative,
    so three 1-D 3-tap passes give the same result with ~20x less HBM traffic.
    """
    x = _maxpool1d(x, axis=3)
    x = _maxpool1d(x, axis=2)
    return _maxpool1d(x, axis=1)


def global_avgpool(x):
    """AdaptiveAvgPool3d((1,1,1)) + flatten -> (B, C) f32, tiled over space."""
    B, T, H, W, C = x.shape
    S = T * H * W
    tile = min(_pad_to(S, 8), 512)
    Sp = _pad_to(S, tile)
    flat = x.reshape(B, S, C)
    if Sp != S:
        flat = jnp.pad(flat, ((0, 0), (0, Sp - S), (0, 0)))
    return pl.pallas_call(
        functools.partial(_avgpool_kernel, inv_count=1.0 / S),
        out_shape=jax.ShapeDtypeStruct((B, C), jnp.float32),
        grid=(Sp // tile,),
        in_specs=[pl.BlockSpec((B, tile, C), lambda i: (0, i, 0))],
        out_specs=pl.BlockSpec((B, C), lambda i: (0, 0)),
        scratch_shapes=[pltpu.VMEM((B, C), jnp.float32)],
        compiler_params=pltpu.CompilerParams(
            dimension_semantics=("arbitrary",)),
    )(flat)


# ----------------------------------------------------------------------------
# ResNet-101-3D parameters (deterministic synthetic init, pre-padded weights)
# ----------------------------------------------------------------------------
def _he_normal(key, shape):
    fan_in = shape[0] * shape[1] * shape[2] * shape[3]
    std = math.sqrt(2.0 / fan_in)
    return jax.random.normal(key, shape, jnp.float32) * std


def _make_bn(cout):
    # BatchNorm3d defaults folded: gamma=1, beta=0, running_mean=0, running_var=1
    scale = jnp.full((cout,), 1.0 / math.sqrt(1.0 + 1e-5), jnp.float32)
    bias = jnp.zeros((cout,), jnp.float32)
    return scale, bias


def _prepare_conv(w, scale, bias, *, ksize, stride, pad):
    """Reshape / pad / cast the conv weight + folded BN once at init time."""
    kt, kh, kw, cin, cout = w.shape
    K, N = kt * kh * kw * cin, cout
    tk = _choose_tk(K)
    Kp, Np = _pad_to(K, tk), _pad_to(N, _LANE)
    wmat = jnp.pad(w.reshape(K, N).astype(jnp.bfloat16),
                   ((0, Kp - K), (0, Np - N)))
    s = jnp.pad(scale.reshape(1, N), ((0, 0), (0, Np - N)))
    b = jnp.pad(bias.reshape(1, N), ((0, 0), (0, Np - N)))
    cfg = dict(ksize=ksize, stride=stride, pad=pad, N=N, tk=tk)
    return cfg, {"w": wmat, "s": s, "b": b}


def build_resnet3d(key, n_input_channels=3, layers=(3, 4, 23, 3), widen_factor=1.0):
    """ResNet-101-3D (shortcut_type='B'); returns (static config, array params)."""
    planes_list = [int(64 * widen_factor), int(128 * widen_factor),
                   int(256 * widen_factor), int(512 * widen_factor)]
    config, params = {}, {}
    key, k = jax.random.split(key)
    # conv1: kernel (7,7,7), stride (1,2,2), padding (3,3,3), no bias
    c_cfg, c_par = _prepare_conv(
        _he_normal(k, (7, 7, 7, n_input_channels, planes_list[0])),
        *_make_bn(planes_list[0]),
        ksize=(7, 7, 7), stride=(1, 2, 2), pad=(3, 3, 3))
    config["conv1"], params["conv1"] = c_cfg, c_par

    in_planes = planes_list[0]
    config["layers"], params["layers"] = [], []
    for li, (planes, nblocks) in enumerate(zip(planes_list, layers)):
        layer_stride = 1 if li == 0 else 2
        bcfgs, bpars = [], []
        for bi in range(nblocks):
            s = layer_stride if bi == 0 else 1
            key, k1, k2, k3, k4 = jax.random.split(key, 5)
            c1 = _prepare_conv(_he_normal(k1, (1, 1, 1, in_planes, planes)),
                               *_make_bn(planes),
                               ksize=(1, 1, 1), stride=(1, 1, 1), pad=(0, 0, 0))
            c2 = _prepare_conv(_he_normal(k2, (3, 3, 3, planes, planes)),
                               *_make_bn(planes),
                               ksize=(3, 3, 3), stride=(s, s, s), pad=(1, 1, 1))
            c3 = _prepare_conv(
                _he_normal(k3, (1, 1, 1, planes, planes * EXPANSION)),
                *_make_bn(planes * EXPANSION),
                ksize=(1, 1, 1), stride=(1, 1, 1), pad=(0, 0, 0))
            bc = {"conv1": c1[0], "conv2": c2[0], "conv3": c3[0]}
            bp = {"conv1": c1[1], "conv2": c2[1], "conv3": c3[1]}
            if s != 1 or in_planes != planes * EXPANSION:
                # shortcut_type='B': 1x1x1 conv + BN downsample
                d = _prepare_conv(
                    _he_normal(k4, (1, 1, 1, in_planes, planes * EXPANSION)),
                    *_make_bn(planes * EXPANSION),
                    ksize=(1, 1, 1), stride=(s, s, s), pad=(0, 0, 0))
                bc["down"], bp["down"] = d[0], d[1]
            else:
                bc["down"], bp["down"] = None, None
            bcfgs.append(bc)
            bpars.append(bp)
            in_planes = planes * EXPANSION
        # blocks >= 2 of a layer are identical: pre-stack their params once so
        # the forward can lax.scan over them (single compiled block body).
        rest = (jax.tree_util.tree_map(lambda *xs: jnp.stack(xs), *bpars[1:])
                if nblocks > 1 else None)
        config["layers"].append({"first": bcfgs[0],
                                 "rest": bcfgs[1] if nblocks > 1 else None})
        params["layers"].append({"first": bpars[0], "rest": rest})
    return config, params


# ----------------------------------------------------------------------------
# Forward pass
# ----------------------------------------------------------------------------
def bottleneck(x, p, cfg):
    out = conv3d_bn_act(x, p["conv1"], cfg["conv1"], relu=True)
    out = conv3d_bn_act(out, p["conv2"], cfg["conv2"], relu=True)
    if cfg["down"] is not None:
        resid = conv3d_bn_act(x, p["down"], cfg["down"], relu=False)
    else:
        resid = x
    # conv3 + BN + residual add + ReLU, all fused into the matmul epilogue
    return conv3d_bn_act(out, p["conv3"], cfg["conv3"], res=resid, relu=True)


def make_forward(config):
    """Whole network over ALL sliding 16-frame windows as one jitted pass."""

    def forward(video, params):
        b, t, h, w, c = video.shape
        nwin = t - 16   # matches `for start in range(t - 16)` in the PyTorch loop
        windows = jnp.concatenate([video[:, s:s + 16] for s in range(nwin)],
                                  axis=0).astype(jnp.bfloat16)
        x = conv3d_bn_act(windows, params["conv1"], config["conv1"], relu=True)
        x = maxpool3d(x)
        for lcfg, lpar in zip(config["layers"], params["layers"]):
            x = bottleneck(x, lpar["first"], lcfg["first"])
            if lpar["rest"] is not None:
                def body(carry, bp, _cfg=lcfg["rest"]):
                    return bottleneck(carry, bp, _cfg), None
                x, _ = jax.lax.scan(body, x, lpar["rest"])
        return global_avgpool(x)   # (nwin*b, 2048) == imgsample.view(size(0), -1)

    return jax.jit(forward)


# ----------------------------------------------------------------------------
if __name__ == "__main__":
    key = jax.random.PRNGKey(0)
    pkey, xkey, k1, k2 = jax.random.split(key, 4)

    # Self-check of the fused Pallas matmul (bf16 MXU, f32 accumulate/epilogue).
    a = jax.random.normal(k1, (64, 192), jnp.float32)
    bm = jax.random.normal(k2, (192, 96), jnp.float32)
    sc = jnp.full((96,), 0.5, jnp.float32)
    bi = jnp.full((96,), 0.1, jnp.float32)
    mm_cfg, mm_par = _prepare_conv(bm.reshape(1, 1, 1, 192, 96), sc, bi,
                                   ksize=(1, 1, 1), stride=(1, 1, 1),
                                   pad=(0, 0, 0))
    got = _fused_matmul(a, mm_par["w"], mm_par["s"], mm_par["b"], None,
                        relu=True, n_out=96, tk=mm_cfg["tk"]).astype(jnp.float32)
    want = jnp.maximum(a @ bm * 0.5 + 0.1, 0.0)
    rel = jnp.max(jnp.abs(got - want)) / (jnp.max(jnp.abs(want)) + 1e-6)
    assert float(rel) < 0.05, float(rel)

    # ResNet-101-3D parameters (model_depth=101 -> bottleneck layers [3,4,23,3]).
    config, params = build_resnet3d(pkey)
    forward = make_forward(config)

    # Synthetic preprocessed video: batch=1, T=18 frames, H=W=32, 3 channels.
    # (Equivalent to the torch tensor of shape (1, 3, 18, 32, 32) in NCDHW.)
    B, T, H, W, C = 1, 18, 32, 32, 3
    video = jax.random.uniform(xkey, (B, T, H, W, C), jnp.float32)

    feats = jax.block_until_ready(forward(video, params))
    feats = jnp.squeeze(feats)
    assert feats.shape == (T - 16, 512 * EXPANSION), feats.shape
    assert bool(jnp.all(jnp.isfinite(feats)))
    print("KERNEL_OK")
</pallas_src>

<mosaic_0001>
module attributes {stable_mosaic.version = 11 : i64} {
  func.func @_mm_bn_kernel(%arg0: i32, %arg1: i32, %arg2: i32, %arg3: memref<64x256xbf16, #tpu.memory_space<vmem>>, %arg4: memref<256x128xbf16, #tpu.memory_space<vmem>>, %arg5: memref<1x128xf32, #tpu.memory_space<vmem>>, %arg6: memref<1x128xf32, #tpu.memory_space<vmem>>, %arg7: memref<64x128xbf16, #tpu.memory_space<vmem>>, %arg8: memref<64x128xf32, #tpu.memory_space<vmem>>) attributes {dimension_semantics = [#tpu.dimension_semantics<parallel>, #tpu.dimension_semantics<parallel>, #tpu.dimension_semantics<arbitrary>], iteration_bounds = array<i64: 1, 1, 1>, scalar_prefetch = 0 : i64, scratch_operands = 1 : i64, tpu.core_type = #tpu.core_type<tc>, window_params = [{transform_indices = @transform_0, window_bounds = array<i64: 64, 256>}, {transform_indices = @transform_1, window_bounds = array<i64: 256, 128>}, {transform_indices = @transform_2, window_bounds = array<i64: 1, 128>}, {transform_indices = @transform_3, window_bounds = array<i64: 1, 128>}, {transform_indices = @transform_4, window_bounds = array<i64: 64, 128>}]} {
    %c0_i32 = arith.constant 0 : i32
    %0 = arith.cmpi eq, %arg2, %c0_i32 : i32
    %1 = arith.extui %0 : i1 to i32
    %c0_i32_0 = arith.constant 0 : i32
    %2 = arith.cmpi ne, %1, %c0_i32_0 : i32
    scf.if %2 {
      %cst_10 = arith.constant 0.000000e+00 : f32
      %12 = vector.broadcast %cst_10 : f32 to vector<64x128xf32>
      %c0_11 = arith.constant 0 : index
      %c0_12 = arith.constant 0 : index
      %13 = vector.load %arg8[%c0_11, %c0_12] : memref<64x128xf32, #tpu.memory_space<vmem>>, vector<64x128xf32>
      tpu.vector_store %arg8[%c0_11, %c0_12], %12 {strides = array<i32>} : memref<64x128xf32, #tpu.memory_space<vmem>>, vector<64x128xf32>,
    } else {
    }
    %c0 = arith.constant 0 : index
    %c0_1 = arith.constant 0 : index
    %3 = vector.load %arg8[%c0, %c0_1] : memref<64x128xf32, #tpu.memory_space<vmem>>, vector<64x128xf32>
    %c0_2 = arith.constant 0 : index
    %c0_3 = arith.constant 0 : index
    %4 = vector.load %arg3[%c0_2, %c0_3] : memref<64x256xbf16, #tpu.memory_space<vmem>>, vector<64x256xbf16>
    %c0_4 = arith.constant 0 : index
    %c0_5 = arith.constant 0 : index
    %5 = vector.load %arg4[%c0_4, %c0_5] : memref<256x128xbf16, #tpu.memory_space<vmem>>, vector<256x128xbf16>
    %cst = arith.constant dense<0.000000e+00> : vector<64x128xf32>
    %6 = tpu.matmul %4, %5, %cst {dimension_numbers = #tpu.dot_dimension_numbers<[1], [0], [0], [1], [0, 0, 1, 1], [], []>} : vector<64x256xbf16>, vector<256x128xbf16>, vector<64x128xf32> -> vector<64x128xf32>
    %7 = arith.addf %3, %6 : vector<64x128xf32>
    %c0_6 = arith.constant 0 : index
    %c0_7 = arith.constant 0 : index
    %8 = vector.load %arg8[%c0_6, %c0_7] : memref<64x128xf32, #tpu.memory_space<vmem>>, vector<64x128xf32>
    tpu.vector_store %arg8[%c0_6, %c0_7], %7 {strides = array<i32>} : memref<64x128xf32, #tpu.memory_space<vmem>>, vector<64x128xf32>,
    %c0_i32_8 = arith.constant 0 : i32
    %9 = arith.cmpi eq, %arg2, %c0_i32_8 : i32
    %10 = arith.extui %9 : i1 to i32
    %c0_i32_9 = arith.constant 0 : i32
    %11 = arith.cmpi ne, %10, %c0_i32_9 : i32
    scf.if %11 {
      %c0_10 = arith.constant 0 : index
      %c0_11 = arith.constant 0 : index
      %12 = vector.load %arg8[%c0_10, %c0_11] : memref<64x128xf32, #tpu.memory_space<vmem>>, vector<64x128xf32>
      %c0_12 = arith.constant 0 : index
      %c0_13 = arith.constant 0 : index
      %13 = vector.load %arg5[%c0_12, %c0_13] : memref<1x128xf32, #tpu.memory_space<vmem>>, vector<1x128xf32>
      %14 = vector.broadcast %13 : vector<1x128xf32> to vector<64x128xf32>
      %15 = arith.mulf %12, %14 : vector<64x128xf32>
      %c0_14 = arith.constant 0 : index
      %c0_15 = arith.constant 0 : index
      %16 = vector.load %arg6[%c0_14, %c0_15] : memref<1x128xf32, #tpu.memory_space<vmem>>, vector<1x128xf32>
      %17 = vector.broadcast %16 : vector<1x128xf32> to vector<64x128xf32>
      %18 = arith.addf %15, %17 : vector<64x128xf32>
      %cst_16 = arith.constant 0.000000e+00 : f32
      %19 = vector.broadcast %cst_16 : f32 to vector<64x128xf32>
      %20 = arith.maximumf %18, %19 : vector<64x128xf32>
      %21 = arith.truncf %20 : vector<64x128xf32> to vector<64x128xbf16>
      %c0_17 = arith.constant 0 : index
      %c0_18 = arith.constant 0 : index
      %22 = vector.load %arg7[%c0_17, %c0_18] : memref<64x128xbf16, #tpu.memory_space<vmem>>, vector<64x128xbf16>
      tpu.vector_store %arg7[%c0_17, %c0_18], %21 {strides = array<i32>} : memref<64x128xbf16, #tpu.memory_space<vmem>>, vector<64x128xbf16>,
    } else {
    }
    return
  }
  func.func @transform_0(%arg0: i32, %arg1: i32, %arg2: i32) -> (i32, i32) {
    %c0_i32 = arith.constant 0 : i32
    return %arg0, %arg2 : i32, i32
  }
  func.func @transform_1(%arg0: i32, %arg1: i32, %arg2: i32) -> (i32, i32) {
    %c0_i32 = arith.constant 0 : i32
    return %arg2, %arg1 : i32, i32
  }
  func.func @transform_2(%arg0: i32, %arg1: i32, %arg2: i32) -> (i32, i32) {
    %c0_i32 = arith.constant 0 : i32
    %c0_i32_0 = arith.constant 0 : i32
    return %c0_i32, %arg1 : i32, i32
  }
  func.func @transform_3(%arg0: i32, %arg1: i32, %arg2: i32) -> (i32, i32) {
    %c0_i32 = arith.constant 0 : i32
    %c0_i32_0 = arith.constant 0 : i32
    return %c0_i32, %arg1 : i32, i32
  }
  func.func @transform_4(%arg0: i32, %arg1: i32, %arg2: i32) -> (i32, i32) {
    %c0_i32 = arith.constant 0 : i32
    return %arg0, %arg1 : i32, i32
  }
}

</mosaic_0001>

<llo_original>
// kernel: tpu_custom_call.1
$region0: #{tpu_custom_call.1}
  #allocation0 [shape = 'u32[]', space=smem, size = 0x4, offset = 0x4, fixed_abs, tag = 'smem constant byte address 0x4 - core index']
  #allocation1 [shape = 'u32[144,128]{1,0:T(1,128)}', space=vmem, size = 0x12000, scoped, tag = 'internal scratch']
  #allocation2 [shape = 'f32[64,128]{1,0:T(8,128)}', space=vmem, size = 0x8000, scoped, tag = 'scratch operand']
  %s0 = inlined_call_operand.hbm [shape: bf16[64,256], index: 0, kind: input, shape index: {}]
  %s1 = inlined_call_operand.hbm [shape: bf16[256,128], index: 1, kind: input, shape index: {}]
  %s2 = inlined_call_operand.vmem [shape: f32[1,128], index: 2, kind: input, shape index: {}]
  %s3 = inlined_call_operand.vmem [shape: f32[1,128], index: 3, kind: input, shape index: {}]
  %s4 = inlined_call_operand.hbm [shape: bf16[64,128], index: 4, kind: output, shape index: {}]
  %s5 = sld [smem:[#allocation0]]
  $region42: #{tpu_custom_call.1} parent=0
    _
  %s7 = ssub.s32 1, %s5
  %s8 = scalar_select 0, %s7, %s5
  $region1: #{tpu_custom_call.1} parent=0
    #allocation3 [shape = 'u8[32768]{0}', space=vmem, size = 0x8000, scoped, tag = 'input window, operand 0, single buffered']
    #allocation4 [shape = 's32[1]{0}', space=sflag, size = 0x4, scoped, tag = 'scoped memory for tpu_custom_call.1']
    #allocation5 [shape = 's32[1]{0}', space=sflag, size = 0x4, scoped, tag = 'scoped memory for tpu_custom_call.1']
    #allocation6 [shape = 'u8[65536]{0}', space=vmem, size = 0x10000, scoped, tag = 'input window, operand 1, single buffered']
    #allocation7 [shape = 's32[1]{0}', space=sflag, size = 0x4, scoped, tag = 'scoped memory for tpu_custom_call.1']
    #allocation8 [shape = 'u8[16384]{0}', space=vmem, size = 0x4000, scoped, tag = 'output window, operand 0, single buffered']
    %9 = vsyncpa [#allocation4], 0
    %10 = vsyncpa [#allocation7], 0
    %11 = vsyncpa [#allocation5], 0
    // Predicated region
    $region2: #{tpu_custom_call.1} parent=1 // pred_check
      _
    $region3: #{tpu_custom_call.1} parent=1 // pred_check_branch
      %13 = sbr.rel (0) target = $region5
    $region4: #{tpu_custom_call.1} parent=1 // pred_region
      %s15 = ssub.s32 1024, 1024
      %16 = vsyncadd [#allocation4], %s15
      %s17 = sshll.u32 [#allocation3], 4
      %s18 = int_to_ptr.vmem [resolvable:$true] %s17
      %23 = dma.hbm_to_vmem [thread:$0]  %s0, 1024, %s18, [#allocation4], 128, 128, 8
    $region5: #{tpu_custom_call.1} parent=1 // pred_fallthru
      _
    // Predicated region
    $region6: #{tpu_custom_call.1} parent=1 // pred_check
      _
    $region7: #{tpu_custom_call.1} parent=1 // pred_check_branch
      %25 = sbr.rel (0) target = $region9
    $region8: #{tpu_custom_call.1} parent=1 // pred_region
      %s27 = ssub.s32 2048, 2048
      %28 = vsyncadd [#allocation7], %s27
      %s29 = sshll.u32 [#allocation6], 4
      %s30 = int_to_ptr.vmem [resolvable:$true] %s29
      %35 = dma.hbm_to_vmem [thread:$0]  %s1, 2048, %s30, [#allocation7], 64, 64, 4
    $region9: #{tpu_custom_call.1} parent=1 // pred_fallthru
      _
    // Predicated region
    $region10: #{tpu_custom_call.1} parent=1 // pred_check
      _
    $region11: #{tpu_custom_call.1} parent=1 // pred_check_branch
      %37 = sbr.rel (0) target = $region13
    $region12: #{tpu_custom_call.1} parent=1 // pred_region
      _
    $region13: #{tpu_custom_call.1} parent=1 // pred_fallthru
      _
    // Predicated region
    $region14: #{tpu_custom_call.1} parent=1 // pred_check
      _
    $region15: #{tpu_custom_call.1} parent=1 // pred_check_branch
      %39 = sbr.rel (0) target = $region17
    $region16: #{tpu_custom_call.1} parent=1 // pred_region
      _
    $region17: #{tpu_custom_call.1} parent=1 // pred_fallthru
      _
    // Predicated region
    $region18: #{tpu_custom_call.1} parent=1 // pred_check
      _
    $region19: #{tpu_custom_call.1} parent=1 // pred_check_branch
      %41 = sbr.rel (0) target = $region21
    $region20: #{tpu_custom_call.1} parent=1 // pred_region
      %42 = dma.done [#allocation4], 1024
    $region21: #{tpu_custom_call.1} parent=1 // pred_fallthru
      _
    // Predicated region
    $region22: #{tpu_custom_call.1} parent=1 // pred_check
      _
    $region23: #{tpu_custom_call.1} parent=1 // pred_check_branch
      %44 = sbr.rel (0) target = $region25
    $region24: #{tpu_custom_call.1} parent=1 // pred_region
      %45 = dma.done [#allocation7], 2048
    $region25: #{tpu_custom_call.1} parent=1 // pred_fallthru
      _
    %p47 = scmp.eq.s32.totalorder 0, 0
    // Predicated region
    $region26: #{tpu_custom_call.1} parent=1 // pred_check
      %p48 = pneg %p47
    $region27: #{tpu_custom_call.1} parent=1 // pred_check_branch
      %50 = sbr.rel (%p48) target = $region29
    $region28: #{tpu_custom_call.1} parent=1 // pred_region
      %51 = vst [vmem:[#allocation2] sm:$0xff] 0.0
      %52 = vst [vmem:[#allocation2 + $0x8] sm:$0xff] 0.0
      %53 = vst [vmem:[#allocation2 + $0x10] sm:$0xff] 0.0
      %54 = vst [vmem:[#allocation2 + $0x18] sm:$0xff] 0.0
      %55 = vst [vmem:[#allocation2 + $0x20] sm:$0xff] 0.0
      %56 = vst [vmem:[#allocation2 + $0x28] sm:$0xff] 0.0
      %57 = vst [vmem:[#allocation2 + $0x30] sm:$0xff] 0.0
      %58 = vst [vmem:[#allocation2 + $0x38] sm:$0xff] 0.0
    $region29: #{tpu_custom_call.1} parent=1 // pred_fallthru
      _
    %v59 = vld [vmem:[#allocation2] sm:$0xff]
    %v60 = vld [vmem:[#allocation2 + $0x8] sm:$0xff]
    %v61 = vld [vmem:[#allocation2 + $0x10] sm:$0xff]
    %v62 = vld [vmem:[#allocation2 + $0x18] sm:$0xff]
    %v63 = vld [vmem:[#allocation2 + $0x20] sm:$0xff]
    %v64 = vld [vmem:[#allocation2 + $0x28] sm:$0xff]
    %v65 = vld [vmem:[#allocation2 + $0x30] sm:$0xff]
    %v66 = vld [vmem:[#allocation2 + $0x38] sm:$0xff]
    %v67 = vld [vmem:[#allocation3] sm:$0xff]
    %v68 = vld [vmem:[#allocation3 + $0x8] sm:$0xff]
    %v69 = vld [vmem:[#allocation3 + $0x10] sm:$0xff]
    %v70 = vld [vmem:[#allocation3 + $0x18] sm:$0xff]
    %v71 = vld [vmem:[#allocation3 + $0x20] sm:$0xff]
    %v72 = vld [vmem:[#allocation3 + $0x28] sm:$0xff]
    %v73 = vld [vmem:[#allocation3 + $0x30] sm:$0xff]
    %v74 = vld [vmem:[#allocation3 + $0x38] sm:$0xff]
    %v75 = vld [vmem:[#allocation6] sm:$0xf]
    %v76 = vld [vmem:[#allocation6 + $0x4] sm:$0xf]
    %v77 = vld [vmem:[#allocation6 + $0x8] sm:$0xf]
    %v78 = vld [vmem:[#allocation6 + $0xc] sm:$0xf]
    %v79 = vld [vmem:[#allocation6 + $0x10] sm:$0xf]
    %v80 = vld [vmem:[#allocation6 + $0x14] sm:$0xf]
    %v81 = vld [vmem:[#allocation6 + $0x18] sm:$0xf]
    %v82 = vld [vmem:[#allocation6 + $0x1c] sm:$0xf]
    %v83 = vld [vmem:[#allocation6 + $0x20] sm:$0xf]
    %v84 = vld [vmem:[#allocation6 + $0x24] sm:$0xf]
    %v85 = vld [vmem:[#allocation6 + $0x28] sm:$0xf]
    %v86 = vld [vmem:[#allocation6 + $0x2c] sm:$0xf]
    %v87 = vld [vmem:[#allocation6 + $0x30] sm:$0xf]
    %v88 = vld [vmem:[#allocation6 + $0x34] sm:$0xf]
    %v89 = vld [vmem:[#allocation6 + $0x38] sm:$0xf]
    %v90 = vld [vmem:[#allocation6 + $0x3c] sm:$0xf]
    %v91 = vld [vmem:[#allocation6 + $0x40] sm:$0xf]
    %v92 = vld [vmem:[#allocation6 + $0x44] sm:$0xf]
    %v93 = vld [vmem:[#allocation6 + $0x48] sm:$0xf]
    %v94 = vld [vmem:[#allocation6 + $0x4c] sm:$0xf]
    %v95 = vld [vmem:[#allocation6 + $0x50] sm:$0xf]
    %v96 = vld [vmem:[#allocation6 + $0x54] sm:$0xf]
    %v97 = vld [vmem:[#allocation6 + $0x58] sm:$0xf]
    %v98 = vld [vmem:[#allocation6 + $0x5c] sm:$0xf]
    %v99 = vld [vmem:[#allocation6 + $0x60] sm:$0xf]
    %v100 = vld [vmem:[#allocation6 + $0x64] sm:$0xf]
    %v101 = vld [vmem:[#allocation6 + $0x68] sm:$0xf]
    %v102 = vld [vmem:[#allocation6 + $0x6c] sm:$0xf]
    %v103 = vld [vmem:[#allocation6 + $0x70] sm:$0xf]
    %v104 = vld [vmem:[#allocation6 + $0x74] sm:$0xf]
    %v105 = vld [vmem:[#allocation6 + $0x78] sm:$0xf]
    %v106 = vld [vmem:[#allocation6 + $0x7c] sm:$0xf]
    %v115 = vunpack.c.l.b16 %v67
    %v116 = vunpack.c.h.b16 %v67
    %v117 = vunpack.c.l.b16 %v68
    %v118 = vunpack.c.h.b16 %v68
    %v119 = vunpack.c.l.b16 %v69
    %v120 = vunpack.c.h.b16 %v69
    %v121 = vunpack.c.l.b16 %v70
    %v122 = vunpack.c.h.b16 %v70
    %v123 = vunpack.c.l.b16 %v71
    %v124 = vunpack.c.h.b16 %v71
    %v125 = vunpack.c.l.b16 %v72
    %v126 = vunpack.c.h.b16 %v72
    %v127 = vunpack.c.l.b16 %v73
    %v128 = vunpack.c.h.b16 %v73
    %v129 = vunpack.c.l.b16 %v74
    %v130 = vunpack.c.h.b16 %v74
    %v131 = vpack.c.b16 %v117, %v115
    %v132 = vpack.c.b16 %v118, %v116
    %v133 = vpack.c.b16 %v121, %v119
    %v134 = vpack.c.b16 %v122, %v120
    %v135 = vpack.c.b16 %v125, %v123
    %v136 = vpack.c.b16 %v126, %v124
    %v137 = vpack.c.b16 %v129, %v127
    %v138 = vpack.c.b16 %v130, %v128
    %v179 = vunpack.c.l.b16 %v75
    %v180 = vunpack.c.l.b16 %v76
    %v181 = vunpack.c.l.b16 %v77
    %v182 = vunpack.c.l.b16 %v78
    %v183 = vunpack.c.l.b16 %v79
    %v184 = vunpack.c.l.b16 %v80
    %v185 = vunpack.c.l.b16 %v81
    %v186 = vunpack.c.l.b16 %v82
    %v187 = vunpack.c.l.b16 %v83
    %v188 = vunpack.c.l.b16 %v84
    %v189 = vunpack.c.l.b16 %v85
    %v190 = vunpack.c.l.b16 %v86
    %v191 = vunpack.c.l.b16 %v87
    %v192 = vunpack.c.l.b16 %v88
    %v193 = vunpack.c.l.b16 %v89
    %v194 = vunpack.c.l.b16 %v90
    %v195 = vunpack.c.l.b16 %v91
    %v196 = vunpack.c.l.b16 %v92
    %v197 = vunpack.c.l.b16 %v93
    %v198 = vunpack.c.l.b16 %v94
    %v199 = vunpack.c.l.b16 %v95
    %v200 = vunpack.c.l.b16 %v96
    %v201 = vunpack.c.l.b16 %v97
    %v202 = vunpack.c.l.b16 %v98
    %v203 = vunpack.c.l.b16 %v99
    %v204 = vunpack.c.l.b16 %v100
    %v205 = vunpack.c.l.b16 %v101
    %v206 = vunpack.c.l.b16 %v102
    %v207 = vunpack.c.l.b16 %v103
    %v208 = vunpack.c.l.b16 %v104
    %v209 = vunpack.c.l.b16 %v105
    %v210 = vunpack.c.l.b16 %v106
    %v211 = vpack.c.b16 %v180, %v179
    %v212 = vpack.c.b16 %v182, %v181
    %v213 = vpack.c.b16 %v184, %v183
    %v214 = vpack.c.b16 %v186, %v185
    %v215 = vpack.c.b16 %v188, %v187
    %v216 = vpack.c.b16 %v190, %v189
    %v217 = vpack.c.b16 %v192, %v191
    %v218 = vpack.c.b16 %v194, %v193
    %v219 = vpack.c.b16 %v196, %v195
    %v220 = vpack.c.b16 %v198, %v197
    %v221 = vpack.c.b16 %v200, %v199
    %v222 = vpack.c.b16 %v202, %v201
    %v223 = vpack.c.b16 %v204, %v203
    %v224 = vpack.c.b16 %v206, %v205
    %v225 = vpack.c.b16 %v208, %v207
    %v226 = vpack.c.b16 %v210, %v209
    %243 = vmatprep.subr.bf16.mxu0 0
    %244 = vmatpush1.bf16.msra.mxu0 %v211
    %245 = vmatprep.subr.bf16.mxu0 0
    %246 = vmatpush1.bf16.msra.mxu0 %v212
    %247 = vmatprep.subr.bf16.mxu0 0
    %248 = vmatpush1.bf16.msra.mxu0 %v213
    %249 = vmatprep.subr.bf16.mxu0 0
    %250 = vmatpush1.bf16.msra.mxu0 %v214
    %251 = vmatprep.subr.bf16.mxu0 0
    %252 = vmatpush1.bf16.msra.mxu0 %v215
    %253 = vmatprep.subr.bf16.mxu0 0
    %254 = vmatpush1.bf16.msra.mxu0 %v216
    %255 = vmatprep.subr.bf16.mxu0 0
    %256 = vmatpush1.bf16.msra.mxu0 %v217
    %257 = vmatprep.subr.bf16.mxu0 0
    %258 = vmatpush1.bf16.msra.mxu0 %v218
    %259 = vmatprep.subr.bf16.mxu0 0
    %260 = vmatpush1.bf16.msra.mxu0 %v219
    %261 = vmatprep.subr.bf16.mxu0 0
    %262 = vmatpush1.bf16.msra.mxu0 %v220
    %263 = vmatprep.subr.bf16.mxu0 0
    %264 = vmatpush1.bf16.msra.mxu0 %v221
    %265 = vmatprep.subr.bf16.mxu0 0
    %266 = vmatpush1.bf16.msra.mxu0 %v222
    %267 = vmatprep.subr.bf16.mxu0 0
    %268 = vmatpush1.bf16.msra.mxu0 %v223
    %269 = vmatprep.subr.bf16.mxu0 0
    %270 = vmatpush1.bf16.msra.mxu0 %v224
    %271 = vmatprep.subr.bf16.mxu0 0
    %272 = vmatpush1.bf16.msra.mxu0 %v225
    %273 = vmatprep.subr.bf16.mxu0 0
    %274 = vmatpush1.bf16.msra.mxu0 %v226
    %275 = vmatprep.mubr.bf16.mxu0 %v132
    %276 = vmatmul.mubr.bf16.gmra.mrb[0].mxu0 %v131
    %v277 = vpop.f32.mrb[0].mxu0
    %v278 = vadd.f32 0.0, %v277
    %v279 = vpop.f32.mrb[0].mxu0
    %v280 = vpop.f32.mrb[0].mxu0
    %v281 = vadd.f32 0.0, %v280
    %v282 = vpop.f32.mrb[0].mxu0
    %283 = vmatprep.mubr.bf16.mxu0 %v134
    %284 = vmatmul.mubr.bf16.gmra.mrb[0].mxu0 %v133
    %v285 = vpop.f32.mrb[0].mxu0
    %v286 = vadd.f32 0.0, %v285
    %v287 = vpop.f32.mrb[0].mxu0
    %v288 = vpop.f32.mrb[0].mxu0
    %v289 = vadd.f32 0.0, %v288
    %v290 = vpop.f32.mrb[0].mxu0
    %291 = vmatprep.mubr.bf16.mxu0 %v136
    %292 = vmatmul.mubr.bf16.gmra.mrb[0].mxu0 %v135
    %v293 = vpop.f32.mrb[0].mxu0
    %v294 = vadd.f32 0.0, %v293
    %v295 = vpop.f32.mrb[0].mxu0
    %v296 = vpop.f32.mrb[0].mxu0
    %v297 = vadd.f32 0.0, %v296
    %v298 = vpop.f32.mrb[0].mxu0
    %299 = vmatprep.mubr.bf16.mxu0 %v138
    %300 = vmatmul.mubr.bf16.gmra.mrb[0].mxu0 %v137
    %v301 = vpop.f32.mrb[0].mxu0
    %v302 = vadd.f32 0.0, %v301
    %v303 = vpop.f32.mrb[0].mxu0
    %v304 = vpop.f32.mrb[0].mxu0
    %v305 = vadd.f32 0.0, %v304
    %v306 = vpop.f32.mrb[0].mxu0
    %307 = vdwg.mxu0
    %v308 = vadd.f32 %v59, %v278
    %v309 = vadd.f32 %v60, %v281
    %v310 = vadd.f32 %v61, %v286
    %v311 = vadd.f32 %v62, %v289
    %v312 = vadd.f32 %v63, %v294
    %v313 = vadd.f32 %v64, %v297
    %v314 = vadd.f32 %v65, %v302
    %v315 = vadd.f32 %v66, %v305
    %316 = vst [vmem:[#allocation2] sm:$0xff] %v308
    %317 = vst [vmem:[#allocation2 + $0x8] sm:$0xff] %v309
    %318 = vst [vmem:[#allocation2 + $0x10] sm:$0xff] %v310
    %319 = vst [vmem:[#allocation2 + $0x18] sm:$0xff] %v311
    %320 = vst [vmem:[#allocation2 + $0x20] sm:$0xff] %v312
    %321 = vst [vmem:[#allocation2 + $0x28] sm:$0xff] %v313
    %322 = vst [vmem:[#allocation2 + $0x30] sm:$0xff] %v314
    %323 = vst [vmem:[#allocation2 + $0x38] sm:$0xff] %v315
    // Predicated region
    $region30: #{tpu_custom_call.1} parent=1 // pred_check
      %p324 = pneg %p47
    $region31: #{tpu_custom_call.1} parent=1 // pred_check_branch
      %326 = sbr.rel (%p324) target = $region33
    $region32: #{tpu_custom_call.1} parent=1 // pred_region
      %v327 = vld [vmem:[#allocation2] sm:$0xff]
      %v328 = vld [vmem:[#allocation2 + $0x8] sm:$0xff]
      %v329 = vld [vmem:[#allocation2 + $0x10] sm:$0xff]
      %v330 = vld [vmem:[#allocation2 + $0x18] sm:$0xff]
      %v331 = vld [vmem:[#allocation2 + $0x20] sm:$0xff]
      %v332 = vld [vmem:[#allocation2 + $0x28] sm:$0xff]
      %v333 = vld [vmem:[#allocation2 + $0x30] sm:$0xff]
      %v334 = vld [vmem:[#allocation2 + $0x38] sm:$0xff]
      %v335 = vld [vmem:[%s2] sm:$0x1]
      %v337 = vlaneseq
      %v338 = vshrl.u32 %v337, 7
      %v339 = vsub.s32 0, %v338
      %v340 = vrot.slane %v335, %v339
      %v342 = vmul.f32 %v327, %v340
      %v343 = vmul.f32 %v328, %v340
      %v344 = vmul.f32 %v329, %v340
      %v345 = vmul.f32 %v330, %v340
      %v346 = vmul.f32 %v331, %v340
      %v347 = vmul.f32 %v332, %v340
      %v348 = vmul.f32 %v333, %v340
      %v349 = vmul.f32 %v334, %v340
      %v350 = vld [vmem:[%s3] sm:$0x1]
      %v352 = vlaneseq
      %v353 = vshrl.u32 %v352, 7
      %v354 = vsub.s32 0, %v353
      %v355 = vrot.slane %v350, %v354
      %v357 = vadd.f32 %v342, %v355
      %v358 = vadd.f32 %v343, %v355
      %v359 = vadd.f32 %v344, %v355
      %v360 = vadd.f32 %v345, %v355
      %v361 = vadd.f32 %v346, %v355
      %v362 = vadd.f32 %v347, %v355
      %v363 = vadd.f32 %v348, %v355
      %v364 = vadd.f32 %v349, %v355
      %v365 = vmax.f32 %v357, 0.0
      %v366 = vmax.f32 %v358, 0.0
      %v367 = vmax.f32 %v359, 0.0
      %v368 = vmax.f32 %v360, 0.0
      %v369 = vmax.f32 %v361, 0.0
      %v370 = vmax.f32 %v362, 0.0
      %v371 = vmax.f32 %v363, 0.0
      %v372 = vmax.f32 %v364, 0.0
      %v373 = vpack.c.bf16 %v366, %v365
      %v374 = vpack.c.bf16 %v368, %v367
      %v375 = vpack.c.bf16 %v370, %v369
      %v376 = vpack.c.bf16 %v372, %v371
      %v381 = vunpack.c.l.b16 %v373
      %v382 = vunpack.c.h.b16 %v373
      %v383 = vunpack.c.l.b16 %v374
      %v384 = vunpack.c.h.b16 %v374
      %v385 = vunpack.c.l.b16 %v375
      %v386 = vunpack.c.h.b16 %v375
      %v387 = vunpack.c.l.b16 %v376
      %v388 = vunpack.c.h.b16 %v376
      %v389 = vpack.c.b16 %v381, %v381
      %v390 = vpack.c.b16 %v382, %v382
      %v391 = vpack.c.b16 %v383, %v383
      %v392 = vpack.c.b16 %v384, %v384
      %v393 = vpack.c.b16 %v385, %v385
      %v394 = vpack.c.b16 %v386, %v386
      %v395 = vpack.c.b16 %v387, %v387
      %v396 = vpack.c.b16 %v388, %v388
      %405 = vst [vmem:[#allocation8] sm:$0xf] %v389
      %406 = vst [vmem:[#allocation8 + $0x4] sm:$0xf] %v390
      %407 = vst [vmem:[#allocation8 + $0x8] sm:$0xf] %v391
      %408 = vst [vmem:[#allocation8 + $0xc] sm:$0xf] %v392
      %409 = vst [vmem:[#allocation8 + $0x10] sm:$0xf] %v393
      %410 = vst [vmem:[#allocation8 + $0x14] sm:$0xf] %v394
      %411 = vst [vmem:[#allocation8 + $0x18] sm:$0xf] %v395
      %412 = vst [vmem:[#allocation8 + $0x1c] sm:$0xf] %v396
    $region33: #{tpu_custom_call.1} parent=1 // pred_fallthru
      _
    // Predicated region
    $region34: #{tpu_custom_call.1} parent=1 // pred_check
      _
    $region35: #{tpu_custom_call.1} parent=1 // pred_check_branch
      %414 = sbr.rel (0) target = $region37
    $region36: #{tpu_custom_call.1} parent=1 // pred_region
      %s416 = ssub.s32 512, 512
      %417 = vsyncadd [#allocation5], %s416
      %s418 = sshll.u32 [#allocation8], 4
      %s419 = int_to_ptr.vmem [resolvable:$true] %s418
      %424 = dma.vmem_to_hbm [thread:$0]  %s419, 512, %s4, [#allocation5], 64, 64, 4
    $region37: #{tpu_custom_call.1} parent=1 // pred_fallthru
      _
    // Predicated region
    $region38: #{tpu_custom_call.1} parent=1 // pred_check
      _
    $region39: #{tpu_custom_call.1} parent=1 // pred_check_branch
      %426 = sbr.rel (0) target = $region41
    $region40: #{tpu_custom_call.1} parent=1 // pred_region
      %427 = dma.done [#allocation5], 512
    $region41: #{tpu_custom_call.1} parent=1 // pred_fallthru
      _
    %428 = vsyncpa [#allocation4], 1
    %429 = vsyncpa [#allocation7], 1
    %430 = vsyncpa [#allocation5], 1

</llo_original>
